<compile_context>
chip_gen: v7x
topology: tpu7x:2x2x1
jax: 0.10.0
libtpu: 0.0.40
codegen_flags: <defaults>
</compile_context>

<pallas_src>
import jax
import jax.numpy as jnp
from jax.experimental import pallas as pl
from jax.experimental.pallas import tpu as pltpu


def _round_up(x: int, m: int) -> int:
    return ((x + m - 1) // m) * m


def _projection_head_kernel(x_ref, w1_ref, b1_ref, w2_ref, b2_ref, o_ref):
    # In-kernel cast of the streamed f32 activation tile to bf16 (native MXU
    # path); accumulate in f32. Bias add + ReLU run in f32 on the VPU.
    x = x_ref[...].astype(jnp.bfloat16)
    h = jnp.dot(x, w1_ref[...], preferred_element_type=jnp.float32)
    h = jnp.maximum(h + b1_ref[...], 0.0)            # (TM, H) + (1, H) broadcast
    y = jnp.dot(h.astype(jnp.bfloat16), w2_ref[...],
                preferred_element_type=jnp.float32)
    o_ref[...] = (y + b2_ref[...]).astype(o_ref.dtype)


def projection_head_forward(x, w1, b1, w2, b2, *,
                            block_m=2048,
                            xla_fallback_batch=128,
                            vmem_limit_bytes=32 * 1024 * 1024):
    """x: (B, D_in) f32; w1: (D_in, H); b1: (H,); w2: (H, H); b2: (H,) -> (B, H) f32."""
    B, D_in = x.shape
    H = w1.shape[1]

    # bf16 compute weights (tiny, VMEM-resident); biases stay f32.
    w1_c = w1.astype(jnp.bfloat16)
    w2_c = w2.astype(jnp.bfloat16)
    b1_2d = b1.reshape(1, H).astype(jnp.float32)
    b2_2d = b2.reshape(1, H).astype(jnp.float32)

    if B <= xla_fallback_batch:
        # Tiny batch: the whole problem is ~100 KFLOP; a custom kernel launch
        # is strictly slower than letting XLA fuse the two GEMMs.
        h = jnp.maximum(
            jnp.dot(x.astype(jnp.bfloat16), w1_c,
                    preferred_element_type=jnp.float32) + b1_2d, 0.0)
        y = jnp.dot(h.astype(jnp.bfloat16), w2_c,
                    preferred_element_type=jnp.float32) + b2_2d
        return y.astype(x.dtype)

    # Row-tile the batch. Aim for >= ~4 grid steps (pipeline ramp; lets v7x's
    # two TensorCores both stay busy with >= 2 steps each) while capping the
    # tile at block_m rows. tm is a multiple of 8 (sublane tiling); B % tm != 0
    # is handled by Pallas partial-block masking on the last step.
    if B < 8:
        tm = B  # full-array block: no (8,128) divisibility requirement
    else:
        tm = min(block_m, max(8, _round_up(pl.cdiv(B, 4), 8)))
    n_tiles = pl.cdiv(B, tm)

    out = pl.pallas_call(
        _projection_head_kernel,
        out_shape=jax.ShapeDtypeStruct((B, H), x.dtype),
        grid=(n_tiles,),
        in_specs=[
            pl.BlockSpec((tm, D_in), lambda i: (i, 0)),   # streamed activations (f32)
            pl.BlockSpec((D_in, H), lambda i: (0, 0)),    # resident bf16 weights
            pl.BlockSpec((1, H), lambda i: (0, 0)),
            pl.BlockSpec((H, H), lambda i: (0, 0)),
            pl.BlockSpec((1, H), lambda i: (0, 0)),
        ],
        out_specs=pl.BlockSpec((tm, H), lambda i: (i, 0)),
        compiler_params=pltpu.CompilerParams(
            # Batch tiles are independent -> parallel lets v7x's dual
            # TensorCores share the grid; harmless on single-TC v5e/v6e.
            dimension_semantics=("parallel",),
            # Explicit scoped-VMEM limit: v5e defaults to 16 MiB; the f32 x
            # tile + double-buffering at tm=2048 wants headroom.
            vmem_limit_bytes=vmem_limit_bytes,
        ),
    )(x, w1_c, b1_2d, w2_c, b2_2d)

    return out


if __name__ == "__main__":
    # Module dimensions: input_dim = 256 (PyTorch default), tc_hidden_dim = 128.
    D_IN, HIDDEN = 256, 128

    key = jax.random.PRNGKey(0)
    kx, kw1, kb1, kw2, kb2 = jax.random.split(key, 5)

    w1 = jax.random.normal(kw1, (D_IN, HIDDEN), dtype=jnp.float32) * 0.02
    b1 = jax.random.normal(kb1, (HIDDEN,), dtype=jnp.float32) * 0.02
    w2 = jax.random.normal(kw2, (HIDDEN, HIDDEN), dtype=jnp.float32) * 0.02
    b2 = jax.random.normal(kb2, (HIDDEN,), dtype=jnp.float32) * 0.02

    def ref_f32(x):
        h = jnp.maximum(x @ w1 + b1, 0.0)
        return h @ w2 + b2

    def ref_bf16(x):
        # Emulates bf16-rounded matmul inputs with f32 accumulation (what the kernel does).
        f = lambda a: a.astype(jnp.bfloat16).astype(jnp.float32)
        h = jnp.maximum(f(x) @ f(w1) + b1, 0.0)
        return f(h) @ f(w2) + b2

    def check(out, x, B, tag):
        jax.block_until_ready(out)
        assert out.shape == (B, HIDDEN)
        assert jnp.allclose(out, ref_bf16(x), atol=2e-3, rtol=2e-3), f"bf16 mismatch [{tag}] B={B}"
        assert jnp.allclose(out, ref_f32(x), atol=5e-2, rtol=5e-2), f"f32 mismatch [{tag}] B={B}"

    # B=512: 4-tile grid (tm=128).  B=200: ragged batch, partial last block
    # (tm=56, 4 tiles).  B=8: tiny-batch XLA-fallback path.
    for B in (512, 200, 8):
        x = jax.random.normal(jax.random.fold_in(kx, B), (B, D_IN), dtype=jnp.float32)
        out = projection_head_forward(x, w1, b1, w2, b2)
        check(out, x, B, "default")

    # Also force the Pallas path at tiny batch (single full-array tile) for coverage.
    xs = jax.random.normal(jax.random.fold_in(kx, 9), (8, D_IN), dtype=jnp.float32)
    out = projection_head_forward(xs, w1, b1, w2, b2, xla_fallback_batch=0)
    check(out, xs, 8, "forced-pallas")

    print("KERNEL_OK")
</pallas_src>

<mosaic_0001>
module attributes {stable_mosaic.version = 11 : i64} {
  func.func @_projection_head_kernel(%arg0: i32, %arg1: memref<128x256xf32, #tpu.memory_space<vmem>>, %arg2: memref<256x128xbf16, #tpu.memory_space<vmem>>, %arg3: memref<1x128xf32, #tpu.memory_space<vmem>>, %arg4: memref<128x128xbf16, #tpu.memory_space<vmem>>, %arg5: memref<1x128xf32, #tpu.memory_space<vmem>>, %arg6: memref<128x128xf32, #tpu.memory_space<vmem>>) attributes {dimension_semantics = [#tpu.dimension_semantics<parallel>], iteration_bounds = array<i64: 4>, scalar_prefetch = 0 : i64, scratch_operands = 0 : i64, tpu.core_type = #tpu.core_type<tc>, window_params = [{transform_indices = @transform_0, window_bounds = array<i64: 128, 256>}, {pipeline_mode = #tpu.pipeline_mode<synchronous>, transform_indices = @transform_1, window_bounds = array<i64: 256, 128>}, {pipeline_mode = #tpu.pipeline_mode<synchronous>, transform_indices = @transform_2, window_bounds = array<i64: 1, 128>}, {pipeline_mode = #tpu.pipeline_mode<synchronous>, transform_indices = @transform_3, window_bounds = array<i64: 128, 128>}, {pipeline_mode = #tpu.pipeline_mode<synchronous>, transform_indices = @transform_4, window_bounds = array<i64: 1, 128>}, {transform_indices = @transform_5, window_bounds = array<i64: 128, 128>}]} {
    %c0 = arith.constant 0 : index
    %c0_0 = arith.constant 0 : index
    %0 = vector.load %arg1[%c0, %c0_0] : memref<128x256xf32, #tpu.memory_space<vmem>>, vector<128x256xf32>
    %1 = arith.truncf %0 : vector<128x256xf32> to vector<128x256xbf16>
    %c0_1 = arith.constant 0 : index
    %c0_2 = arith.constant 0 : index
    %2 = vector.load %arg2[%c0_1, %c0_2] : memref<256x128xbf16, #tpu.memory_space<vmem>>, vector<256x128xbf16>
    %cst = arith.constant dense<0.000000e+00> : vector<128x128xf32>
    %3 = tpu.matmul %1, %2, %cst {dimension_numbers = #tpu.dot_dimension_numbers<[1], [0], [0], [1], [0, 0, 1, 1], [], []>} : vector<128x256xbf16>, vector<256x128xbf16>, vector<128x128xf32> -> vector<128x128xf32>
    %c0_3 = arith.constant 0 : index
    %c0_4 = arith.constant 0 : index
    %4 = vector.load %arg3[%c0_3, %c0_4] : memref<1x128xf32, #tpu.memory_space<vmem>>, vector<1x128xf32>
    %5 = vector.broadcast %4 : vector<1x128xf32> to vector<128x128xf32>
    %6 = arith.addf %3, %5 : vector<128x128xf32>
    %cst_5 = arith.constant 0.000000e+00 : f32
    %7 = vector.broadcast %cst_5 : f32 to vector<128x128xf32>
    %8 = arith.maximumf %6, %7 : vector<128x128xf32>
    %9 = arith.truncf %8 : vector<128x128xf32> to vector<128x128xbf16>
    %c0_6 = arith.constant 0 : index
    %c0_7 = arith.constant 0 : index
    %10 = vector.load %arg4[%c0_6, %c0_7] : memref<128x128xbf16, #tpu.memory_space<vmem>>, vector<128x128xbf16>
    %cst_8 = arith.constant dense<0.000000e+00> : vector<128x128xf32>
    %11 = tpu.matmul %9, %10, %cst_8 {dimension_numbers = #tpu.dot_dimension_numbers<[1], [0], [0], [1], [0, 0, 1, 1], [], []>} : vector<128x128xbf16>, vector<128x128xbf16>, vector<128x128xf32> -> vector<128x128xf32>
    %c0_9 = arith.constant 0 : index
    %c0_10 = arith.constant 0 : index
    %12 = vector.load %arg5[%c0_9, %c0_10] : memref<1x128xf32, #tpu.memory_space<vmem>>, vector<1x128xf32>
    %13 = vector.broadcast %12 : vector<1x128xf32> to vector<128x128xf32>
    %14 = arith.addf %11, %13 : vector<128x128xf32>
    %c0_11 = arith.constant 0 : index
    %c0_12 = arith.constant 0 : index
    %15 = vector.load %arg6[%c0_11, %c0_12] : memref<128x128xf32, #tpu.memory_space<vmem>>, vector<128x128xf32>
    tpu.vector_store %arg6[%c0_11, %c0_12], %14 {strides = array<i32>} : memref<128x128xf32, #tpu.memory_space<vmem>>, vector<128x128xf32>,
    return
  }
  func.func @transform_0(%arg0: i32) -> (i32, i32) {
    %c0_i32 = arith.constant 0 : i32
    %c0_i32_0 = arith.constant 0 : i32
    return %arg0, %c0_i32 : i32, i32
  }
  func.func @transform_1(%arg0: i32) -> (i32, i32) {
    %c0_i32 = arith.constant 0 : i32
    %c0_i32_0 = arith.constant 0 : i32
    %c0_i32_1 = arith.constant 0 : i32
    return %c0_i32, %c0_i32_0 : i32, i32
  }
  func.func @transform_2(%arg0: i32) -> (i32, i32) {
    %c0_i32 = arith.constant 0 : i32
    %c0_i32_0 = arith.constant 0 : i32
    %c0_i32_1 = arith.constant 0 : i32
    return %c0_i32, %c0_i32_0 : i32, i32
  }
  func.func @transform_3(%arg0: i32) -> (i32, i32) {
    %c0_i32 = arith.constant 0 : i32
    %c0_i32_0 = arith.constant 0 : i32
    %c0_i32_1 = arith.constant 0 : i32
    return %c0_i32, %c0_i32_0 : i32, i32
  }
  func.func @transform_4(%arg0: i32) -> (i32, i32) {
    %c0_i32 = arith.constant 0 : i32
    %c0_i32_0 = arith.constant 0 : i32
    %c0_i32_1 = arith.constant 0 : i32
    return %c0_i32, %c0_i32_0 : i32, i32
  }
  func.func @transform_5(%arg0: i32) -> (i32, i32) {
    %c0_i32 = arith.constant 0 : i32
    %c0_i32_0 = arith.constant 0 : i32
    return %arg0, %c0_i32 : i32, i32
  }
}

</mosaic_0001>

<llo_original>
// kernel: tpu_custom_call.1
$region0: #{tpu_custom_call.1}
  #allocation0 [shape = 'u32[]', space=smem, size = 0x4, offset = 0x4, fixed_abs, tag = 'smem constant byte address 0x4 - core index']
  #allocation1 [shape = 'u32[144,128]{1,0:T(1,128)}', space=vmem, size = 0x12000, scoped, tag = 'internal scratch']
  %s0 = inlined_call_operand.hbm [shape: f32[512,256], index: 0, kind: input, shape index: {}]
  %s1 = inlined_call_operand.hbm [shape: bf16[256,128], index: 1, kind: input, shape index: {}]
  %s2 = inlined_call_operand.vmem [shape: f32[1,128], index: 2, kind: input, shape index: {}]
  %s3 = inlined_call_operand.hbm [shape: bf16[128,128], index: 3, kind: input, shape index: {}]
  %s4 = inlined_call_operand.vmem [shape: f32[1,128], index: 4, kind: input, shape index: {}]
  %s5 = inlined_call_operand.hbm [shape: f32[512,128], index: 5, kind: output, shape index: {}]
  %s6 = sld [smem:[#allocation0]]
  $region65: #{tpu_custom_call.1} parent=0
    _
  %s8 = ssub.s32 1, %s6
  %s9 = scalar_select 0, %s8, %s6
  $region1: #{tpu_custom_call.1} parent=0
    #allocation2 [shape = 'u8[262144]{0}', space=vmem, size = 0x40000, scoped, tag = 'input window, operand 0']
    #allocation3 [shape = 's32[2]{0}', space=sflag, size = 0x8, scoped, tag = 'scoped memory for tpu_custom_call.1']
    #allocation4 [shape = 's32[2]{0}', space=sflag, size = 0x8, scoped, tag = 'scoped memory for tpu_custom_call.1']
    #allocation5 [shape = 'u8[65536]{0}', space=vmem, size = 0x10000, scoped, tag = 'input window, operand 1, single buffered']
    #allocation6 [shape = 's32[1]{0}', space=sflag, size = 0x4, scoped, tag = 'scoped memory for tpu_custom_call.1']
    #allocation7 [shape = 'u8[32768]{0}', space=vmem, size = 0x8000, scoped, tag = 'input window, operand 3, single buffered']
    #allocation8 [shape = 'u8[131072]{0}', space=vmem, size = 0x20000, scoped, tag = 'output window, operand 0']
    %10 = vsyncpa [#allocation3], 0
    %s11 = scalar_lea.sflag [#allocation3], 1
    %12 = vsyncpa %s11, 0
    %13 = vsyncpa [#allocation6], 0
    %14 = vsyncpa [#allocation4], 0
    %s15 = scalar_lea.sflag [#allocation4], 1
    %16 = vsyncpa %s15, 0
    loop: start=0, step=1, limit=6
    $region2: #{tpu_custom_call.1} parent=1 // loop_pre_header
      _
    $region3: #{tpu_custom_call.1} parent=1 // loop_header
      %s18 = sphi 0, %s22
      %p19 = scmp.ge.s32.totalorder %s18, 6
      %s28 = sphi 0, %s30
      %s31 = sphi 0, %s28
      %s32 = sphi 0, %s31
      %s48 = sphi 0, %s32
      %s52 = sphi 0, %s52
      %s54 = sphi 0, %s52
      %s55 = sphi 0, %s54
      %s69 = sphi 0, %s55
      %s73 = sphi 0, %s73
      %s75 = sphi 0, %s73
      %s76 = sphi 0, %s75
      %s90 = sphi 0, %s76
      %s94 = sphi 0, %s94
      %s96 = sphi 0, %s94
      %s97 = sphi 0, %s96
      %s111 = sphi 0, %s97
      %s115 = sphi 0, %s115
      %s117 = sphi 0, %s115
      %s118 = sphi 0, %s117
      %s132 = sphi 0, %s118
      %s138 = sphi 0, %s140
      %s141 = sphi 0, %s138
      %s142 = sphi 0, %s141
      %s158 = sphi 0, %s142
    $region4: #{tpu_custom_call.1} parent=1 // loop_header_branch
      %21 = sbr.rel (%p19) target = $region8
    $region5: #{tpu_custom_call.1} parent=1 // loop_body
      %s23 = ssub.s32 %s18, 1
      %s24 = ssub.s32 %s18, 2
      %s25 = sadd.s32 %s18, 1
      %s26 = ssub.s32 %s18, %s25
      %p27 = scmp.eq.s32.totalorder %s26, 0
      %s29 = sadd.s32 %s28, 1
      %s30 = scalar_select %p27, %s28, %s29
      %p33 = pneg %p27
      %p34 = scmp.eq.s32.totalorder %s18, 3
      %p35 = por %p33, %p34
      %p36 = scmp.ne.s32.totalorder %s28, %s31
      %p37 = scmp.eq.s32.totalorder %s18, 0
      %p38 = por %p36, %p37
      %p39 = scmp.ne.s32.totalorder %s28, %s31
      %p40 = scmp.eq.s32.totalorder %s23, 3
      %p41 = por %p39, %p40
      %p42 = scmp.ne.s32.totalorder %s31, %s32
      %p43 = scmp.eq.s32.totalorder %s23, 0
      %p44 = por %p42, %p43
      %p45 = scmp.ne.s32.totalorder %s31, %s32
      %p46 = scmp.eq.s32.totalorder %s24, 3
      %p47 = por %p45, %p46
      %p49 = scmp.ne.s32.totalorder %s32, %s48
      %p50 = scmp.eq.s32.totalorder %s24, 0
      %p51 = por %p49, %p50
      %s53 = sadd.s32 %s52, 1
      %p56 = scmp.eq.s32.totalorder %s18, 3
      %p57 = scmp.ne.s32.totalorder %s52, %s54
      %p58 = scmp.eq.s32.totalorder %s18, 0
      %p59 = por %p57, %p58
      %p60 = scmp.ne.s32.totalorder %s52, %s54
      %p61 = scmp.eq.s32.totalorder %s23, 3
      %p62 = por %p60, %p61
      %p63 = scmp.ne.s32.totalorder %s54, %s55
      %p64 = scmp.eq.s32.totalorder %s23, 0
      %p65 = por %p63, %p64
      %p66 = scmp.ne.s32.totalorder %s54, %s55
      %p67 = scmp.eq.s32.totalorder %s24, 3
      %p68 = por %p66, %p67
      %p70 = scmp.ne.s32.totalorder %s55, %s69
      %p71 = scmp.eq.s32.totalorder %s24, 0
      %p72 = por %p70, %p71
      %s74 = sadd.s32 %s73, 1
      %p77 = scmp.eq.s32.totalorder %s18, 3
      %p78 = scmp.ne.s32.totalorder %s73, %s75
      %p79 = scmp.eq.s32.totalorder %s18, 0
      %p80 = por %p78, %p79
      %p81 = scmp.ne.s32.totalorder %s73, %s75
      %p82 = scmp.eq.s32.totalorder %s23, 3
      %p83 = por %p81, %p82
      %p84 = scmp.ne.s32.totalorder %s75, %s76
      %p85 = scmp.eq.s32.totalorder %s23, 0
      %p86 = por %p84, %p85
      %p87 = scmp.ne.s32.totalorder %s75, %s76
      %p88 = scmp.eq.s32.totalorder %s24, 3
      %p89 = por %p87, %p88
      %p91 = scmp.ne.s32.totalorder %s76, %s90
      %p92 = scmp.eq.s32.totalorder %s24, 0
      %p93 = por %p91, %p92
      %s95 = sadd.s32 %s94, 1
      %p98 = scmp.eq.s32.totalorder %s18, 3
      %p99 = scmp.ne.s32.totalorder %s94, %s96
      %p100 = scmp.eq.s32.totalorder %s18, 0
      %p101 = por %p99, %p100
      %p102 = scmp.ne.s32.totalorder %s94, %s96
      %p103 = scmp.eq.s32.totalorder %s23, 3
      %p104 = por %p102, %p103
      %p105 = scmp.ne.s32.totalorder %s96, %s97
      %p106 = scmp.eq.s32.totalorder %s23, 0
      %p107 = por %p105, %p106
      %p108 = scmp.ne.s32.totalorder %s96, %s97
      %p109 = scmp.eq.s32.totalorder %s24, 3
      %p110 = por %p108, %p109
      %p112 = scmp.ne.s32.totalorder %s97, %s111
      %p113 = scmp.eq.s32.totalorder %s24, 0
      %p114 = por %p112, %p113
      %s116 = sadd.s32 %s115, 1
      %p119 = scmp.eq.s32.totalorder %s18, 3
      %p120 = scmp.ne.s32.totalorder %s115, %s117
      %p121 = scmp.eq.s32.totalorder %s18, 0
      %p122 = por %p120, %p121
      %p123 = scmp.ne.s32.totalorder %s115, %s117
      %p124 = scmp.eq.s32.totalorder %s23, 3
      %p125 = por %p123, %p124
      %p126 = scmp.ne.s32.totalorder %s117, %s118
      %p127 = scmp.eq.s32.totalorder %s23, 0
      %p128 = por %p126, %p127
      %p129 = scmp.ne.s32.totalorder %s117, %s118
      %p130 = scmp.eq.s32.totalorder %s24, 3
      %p131 = por %p129, %p130
      %p133 = scmp.ne.s32.totalorder %s118, %s132
      %p134 = scmp.eq.s32.totalorder %s24, 0
      %p135 = por %p133, %p134
      %s136 = ssub.s32 %s18, %s25
      %p137 = scmp.eq.s32.totalorder %s136, 0
      %s139 = sadd.s32 %s138, 1
      %s140 = scalar_select %p137, %s138, %s139
      %p143 = pneg %p137
      %p144 = scmp.eq.s32.totalorder %s18, 3
      %p145 = por %p143, %p144
      %p146 = scmp.ne.s32.totalorder %s138, %s141
      %p147 = scmp.eq.s32.totalorder %s18, 0
      %p148 = por %p146, %p147
      %p149 = scmp.ne.s32.totalorder %s138, %s141
      %p150 = scmp.eq.s32.totalorder %s23, 3
      %p151 = por %p149, %p150
      %p152 = scmp.ne.s32.totalorder %s141, %s142
      %p153 = scmp.eq.s32.totalorder %s23, 0
      %p154 = por %p152, %p153
      %p155 = scmp.ne.s32.totalorder %s141, %s142
      %p156 = scmp.eq.s32.totalorder %s24, 3
      %p157 = por %p155, %p156
      %p159 = scmp.ne.s32.totalorder %s142, %s158
      %p160 = scmp.eq.s32.totalorder %s24, 0
      %p161 = por %p159, %p160
      %p162 = scmp.le.s32.totalorder 1, %s18
      %p163 = scmp.lt.s32.totalorder %s18, 5
      %p164 = pnand %p162, %p163
      %p165 = pneg %p164
      // Predicated region
      $region9: #{tpu_custom_call.1} parent=5 // pred_check
        _
      $region10: #{tpu_custom_call.1} parent=5 // pred_check_branch
        %167 = sbr.rel (%p164) target = $region12
      $region11: #{tpu_custom_call.1} parent=5 // pred_region
        %s168 = ssub.s32 %s18, 1
        // Predicated region
        $region13: #{tpu_custom_call.1} parent=11 // pred_check
          %p169 = pneg %p65
        $region14: #{tpu_custom_call.1} parent=11 // pred_check_branch
          %171 = sbr.rel (%p169) target = $region16
        $region15: #{tpu_custom_call.1} parent=11 // pred_region
          %s173 = ssub.s32 2048, 2048
          %174 = vsyncadd [#allocation6], %s173
          %s175 = sshll.u32 [#allocation5], 4
          %s176 = int_to_ptr.vmem [resolvable:$true] %s175
          %181 = dma.hbm_to_vmem [thread:$0]  %s1, 2048, %s176, [#allocation6], 64, 64, 4
        $region16: #{tpu_custom_call.1} parent=11 // pred_fallthru
          _
        // Predicated region
        $region17: #{tpu_custom_call.1} parent=11 // pred_check
          %p182 = pneg %p86
        $region18: #{tpu_custom_call.1} parent=11 // pred_check_branch
          %184 = sbr.rel (%p182) target = $region20
        $region19: #{tpu_custom_call.1} parent=11 // pred_region
          _
        $region20: #{tpu_custom_call.1} parent=11 // pred_fallthru
          _
        // Predicated region
        $region21: #{tpu_custom_call.1} parent=11 // pred_check
          %p185 = pneg %p107
        $region22: #{tpu_custom_call.1} parent=11 // pred_check_branch
          %187 = sbr.rel (%p185) target = $region24
        $region23: #{tpu_custom_call.1} parent=11 // pred_region
          %s189 = ssub.s32 1024, 1024
          %190 = vsyncadd [#allocation6], %s189
          %s191 = sshll.u32 [#allocation7], 4
          %s192 = int_to_ptr.vmem [resolvable:$true] %s191
          %197 = dma.hbm_to_vmem [thread:$0]  %s3, 1024, %s192, [#allocation6], 64, 64, 4
        $region24: #{tpu_custom_call.1} parent=11 // pred_fallthru
          _
        // Predicated region
        $region25: #{tpu_custom_call.1} parent=11 // pred_check
          %p198 = pneg %p128
        $region26: #{tpu_custom_call.1} parent=11 // pred_check_branch
          %200 = sbr.rel (%p198) target = $region28
        $region27: #{tpu_custom_call.1} parent=11 // pred_region
          _
        $region28: #{tpu_custom_call.1} parent=11 // pred_fallthru
          _
      $region12: #{tpu_custom_call.1} parent=5 // pred_fallthru
        _
      %p201 = scmp.lt.s32.totalorder %s18, 4
      // Predicated region
      $region29: #{tpu_custom_call.1} parent=5 // pred_check
        %p202 = pneg %p201
      $region30: #{tpu_custom_call.1} parent=5 // pred_check_branch
        %204 = sbr.rel (%p202) target = $region32
      $region31: #{tpu_custom_call.1} parent=5 // pred_region
        // Predicated region
        $region33: #{tpu_custom_call.1} parent=31 // pred_check
          %p205 = pneg %p38
        $region34: #{tpu_custom_call.1} parent=31 // pred_check_branch
          %207 = sbr.rel (%p205) target = $region36
        $region35: #{tpu_custom_call.1} parent=31 // pred_region
          %s208 = sand.u32 %s28, 1
          %s209 = scalar_lea.sflag [#allocation3], %s208
          %s210 = sand.u32 %s28, 1
          %s211 = smul.addr %s210, 256
          %s212 = scalar_lea.vmem [#allocation2], %s211
          %s213 = smul.u32 16, %s18
          %s215 = ssub.s32 4096, 4096
          %216 = vsyncadd %s209, %s215
          %s217 = smul.addr %s213, 2
          %s218 = smul.addr %s217, 128
          %s219 = scalar_lea.hbm %s0, %s218
          %s220 = sshll.u32 %s212, 4
          %s221 = int_to_ptr.vmem [resolvable:$true] %s220
          %226 = dma.hbm_to_vmem [thread:$0]  %s219, 4096, %s221, %s209, 256, 256, 16
        $region36: #{tpu_custom_call.1} parent=31 // pred_fallthru
          _
      $region32: #{tpu_custom_call.1} parent=5 // pred_fallthru
        _
      %p227 = scmp.le.s32.totalorder 1, %s18
      %p228 = scmp.lt.s32.totalorder %s18, 5
      %p229 = pnand %p227, %p228
      %p230 = pneg %p229
      // Predicated region
      $region37: #{tpu_custom_call.1} parent=5 // pred_check
        _
      $region38: #{tpu_custom_call.1} parent=5 // pred_check_branch
        %232 = sbr.rel (%p229) target = $region40
      $region39: #{tpu_custom_call.1} parent=5 // pred_region
        %s233 = ssub.s32 %s18, 1
        %s234 = sand.u32 %s31, 1
        %s235 = scalar_lea.sflag [#allocation3], %s234
        %s236 = sand.u32 %s31, 1
        %s237 = smul.addr %s236, 256
        %s238 = scalar_lea.vmem [#allocation2], %s237
        // Predicated region
        $region41: #{tpu_custom_call.1} parent=39 // pred_check
          %p239 = pneg %p44
        $region42: #{tpu_custom_call.1} parent=39 // pred_check_branch
          %241 = sbr.rel (%p239) target = $region44
        $region43: #{tpu_custom_call.1} parent=39 // pred_region
          %242 = dma.done %s235, 4096
        $region44: #{tpu_custom_call.1} parent=39 // pred_fallthru
          _
        // Predicated region
        $region45: #{tpu_custom_call.1} parent=39 // pred_check
          %p243 = pneg %p65
        $region46: #{tpu_custom_call.1} parent=39 // pred_check_branch
          %245 = sbr.rel (%p243) target = $region48
        $region47: #{tpu_custom_call.1} parent=39 // pred_region
          %246 = dma.done [#allocation6], 2048
        $region48: #{tpu_custom_call.1} parent=39 // pred_fallthru
          _
        // Predicated region
        $region49: #{tpu_custom_call.1} parent=39 // pred_check
          %p247 = pneg %p107
        $region50: #{tpu_custom_call.1} parent=39 // pred_check_branch
          %249 = sbr.rel (%p247) target = $region52
        $region51: #{tpu_custom_call.1} parent=39 // pred_region
          %250 = dma.done [#allocation6], 1024
        $region52: #{tpu_custom_call.1} parent=39 // pred_fallthru
          _
        %s251 = sand.u32 %s31, 1
        %s252 = scalar_lea.sflag [#allocation3], %s251
        %s253 = sand.u32 %s31, 1
        %s254 = smul.addr %s253, 256
        %s255 = scalar_lea.vmem [#allocation2], %s254
        %p256 = pneg %p44
        %p257 = pneg %p41
        %p258 = pneg %p65
        %p259 = pneg %p62
        %p260 = pneg %p86
        %p261 = pneg %p83
        %p262 = pneg %p107
        %p263 = pneg %p104
        %p264 = pneg %p128
        %p265 = pneg %p125
        %p266 = pneg %p154
        %p267 = pneg %p151
        %s268 = sand.u32 %s141, 1
        %s269 = scalar_lea.sflag [#allocation4], %s268
        %s270 = sand.u32 %s141, 1
        %s271 = smul.addr %s270, 128
        %s272 = scalar_lea.vmem [#allocation8], %s271
        %s273 = smul.u32 16, %s23
        %s274 = smul.u32 16, %s23
        %v276 = vld [vmem:[%s238] sm:$0xff]
        %v277 = vld [vmem:[%s238 + $0x8] sm:$0xff]
        %v278 = vld [vmem:[%s238 + $0x10] sm:$0xff]
        %v279 = vld [vmem:[%s238 + $0x18] sm:$0xff]
        %v280 = vld [vmem:[%s238 + $0x20] sm:$0xff]
        %v281 = vld [vmem:[%s238 + $0x28] sm:$0xff]
        %v282 = vld [vmem:[%s238 + $0x30] sm:$0xff]
        %v283 = vld [vmem:[%s238 + $0x38] sm:$0xff]
        %v284 = vld [vmem:[%s238 + $0x40] sm:$0xff]
        %v285 = vld [vmem:[%s238 + $0x48] sm:$0xff]
        %v286 = vld [vmem:[%s238 + $0x50] sm:$0xff]
        %v287 = vld [vmem:[%s238 + $0x58] sm:$0xff]
        %v288 = vld [vmem:[%s238 + $0x60] sm:$0xff]
        %v289 = vld [vmem:[%s238 + $0x68] sm:$0xff]
        %v290 = vld [vmem:[%s238 + $0x70] sm:$0xff]
        %v291 = vld [vmem:[%s238 + $0x78] sm:$0xff]
        %v292 = vld [vmem:[%s238 + $0x80] sm:$0xff]
        %v293 = vld [vmem:[%s238 + $0x88] sm:$0xff]
        %v294 = vld [vmem:[%s238 + $0x90] sm:$0xff]
        %v295 = vld [vmem:[%s238 + $0x98] sm:$0xff]
        %v296 = vld [vmem:[%s238 + $0xa0] sm:$0xff]
        %v297 = vld [vmem:[%s238 + $0xa8] sm:$0xff]
        %v298 = vld [vmem:[%s238 + $0xb0] sm:$0xff]
        %v299 = vld [vmem:[%s238 + $0xb8] sm:$0xff]
        %v300 = vld [vmem:[%s238 + $0xc0] sm:$0xff]
        %v301 = vld [vmem:[%s238 + $0xc8] sm:$0xff]
        %v302 = vld [vmem:[%s238 + $0xd0] sm:$0xff]
        %v303 = vld [vmem:[%s238 + $0xd8] sm:$0xff]
        %v304 = vld [vmem:[%s238 + $0xe0] sm:$0xff]
        %v305 = vld [vmem:[%s238 + $0xe8] sm:$0xff]
        %v306 = vld [vmem:[%s238 + $0xf0] sm:$0xff]
        %v307 = vld [vmem:[%s238 + $0xf8] sm:$0xff]
        %v308 = vpack.c.bf16 %v278, %v276
        %v309 = vpack.c.bf16 %v279, %v277
        %v310 = vpack.c.bf16 %v282, %v280
        %v311 = vpack.c.bf16 %v283, %v281
        %v312 = vpack.c.bf16 %v286, %v284
        %v313 = vpack.c.bf16 %v287, %v285
        %v314 = vpack.c.bf16 %v290, %v288
        %v315 = vpack.c.bf16 %v291, %v289
        %v316 = vpack.c.bf16 %v294, %v292
        %v317 = vpack.c.bf16 %v295, %v293
        %v318 = vpack.c.bf16 %v298, %v296
        %v319 = vpack.c.bf16 %v299, %v297
        %v320 = vpack.c.bf16 %v302, %v300
        %v321 = vpack.c.bf16 %v303, %v301
        %v322 = vpack.c.bf16 %v306, %v304
        %v323 = vpack.c.bf16 %v307, %v305
        %v324 = vld [vmem:[#allocation5] sm:$0xf]
        %v325 = vld [vmem:[#allocation5 + $0x4] sm:$0xf]
        %v326 = vld [vmem:[#allocation5 + $0x8] sm:$0xf]
        %v327 = vld [vmem:[#allocation5 + $0xc] sm:$0xf]
        %v328 = vld [vmem:[#allocation5 + $0x10] sm:$0xf]
        %v329 = vld [vmem:[#allocation5 + $0x14] sm:$0xf]
        %v330 = vld [vmem:[#allocation5 + $0x18] sm:$0xf]
        %v331 = vld [vmem:[#allocation5 + $0x1c] sm:$0xf]
        %v332 = vld [vmem:[#allocation5 + $0x20] sm:$0xf]
        %v333 = vld [vmem:[#allocation5 + $0x24] sm:$0xf]
        %v334 = vld [vmem:[#allocation5 + $0x28] sm:$0xf]
        %v335 = vld [vmem:[#allocation5 + $0x2c] sm:$0xf]
        %v336 = vld [vmem:[#allocation5 + $0x30] sm:$0xf]
        %v337 = vld [vmem:[#allocation5 + $0x34] sm:$0xf]
        %v338 = vld [vmem:[#allocation5 + $0x38] sm:$0xf]
        %v339 = vld [vmem:[#allocation5 + $0x3c] sm:$0xf]
        %v340 = vld [vmem:[#allocation5 + $0x40] sm:$0xf]
        %v341 = vld [vmem:[#allocation5 + $0x44] sm:$0xf]
        %v342 = vld [vmem:[#allocation5 + $0x48] sm:$0xf]
        %v343 = vld [vmem:[#allocation5 + $0x4c] sm:$0xf]
        %v344 = vld [vmem:[#allocation5 + $0x50] sm:$0xf]
        %v345 = vld [vmem:[#allocation5 + $0x54] sm:$0xf]
        %v346 = vld [vmem:[#allocation5 + $0x58] sm:$0xf]
        %v347 = vld [vmem:[#allocation5 + $0x5c] sm:$0xf]
        %v348 = vld [vmem:[#allocation5 + $0x60] sm:$0xf]
        %v349 = vld [vmem:[#allocation5 + $0x64] sm:$0xf]
        %v350 = vld [vmem:[#allocation5 + $0x68] sm:$0xf]
        %v351 = vld [vmem:[#allocation5 + $0x6c] sm:$0xf]
        %v352 = vld [vmem:[#allocation5 + $0x70] sm:$0xf]
        %v353 = vld [vmem:[#allocation5 + $0x74] sm:$0xf]
        %v354 = vld [vmem:[#allocation5 + $0x78] sm:$0xf]
        %v355 = vld [vmem:[#allocation5 + $0x7c] sm:$0xf]
        %v356 = vld [vmem:[%s2] sm:$0x1]
        %v358 = vlaneseq
        %v359 = vshrl.u32 %v358, 7
        %v360 = vsub.s32 0, %v359
        %v361 = vrot.slane %v356, %v360
        %v395 = vunpack.c.l.b16 %v324
        %v396 = vunpack.c.l.b16 %v325
        %v397 = vunpack.c.l.b16 %v326
        %v398 = vunpack.c.l.b16 %v327
        %v399 = vunpack.c.l.b16 %v328
        %v400 = vunpack.c.l.b16 %v329
        %v401 = vunpack.c.l.b16 %v330
        %v402 = vunpack.c.l.b16 %v331
        %v403 = vunpack.c.l.b16 %v332
        %v404 = vunpack.c.l.b16 %v333
        %v405 = vunpack.c.l.b16 %v334
        %v406 = vunpack.c.l.b16 %v335
        %v407 = vunpack.c.l.b16 %v336
        %v408 = vunpack.c.l.b16 %v337
        %v409 = vunpack.c.l.b16 %v338
        %v410 = vunpack.c.l.b16 %v339
        %v411 = vunpack.c.l.b16 %v340
        %v412 = vunpack.c.l.b16 %v341
        %v413 = vunpack.c.l.b16 %v342
        %v414 = vunpack.c.l.b16 %v343
        %v415 = vunpack.c.l.b16 %v344
        %v416 = vunpack.c.l.b16 %v345
        %v417 = vunpack.c.l.b16 %v346
        %v418 = vunpack.c.l.b16 %v347
        %v419 = vunpack.c.l.b16 %v348
        %v420 = vunpack.c.l.b16 %v349
        %v421 = vunpack.c.l.b16 %v350
        %v422 = vunpack.c.l.b16 %v351
        %v423 = vunpack.c.l.b16 %v352
        %v424 = vunpack.c.l.b16 %v353
        %v425 = vunpack.c.l.b16 %v354
        %v426 = vunpack.c.l.b16 %v355
        %v427 = vpack.c.b16 %v396, %v395
        %v428 = vpack.c.b16 %v398, %v397
        %v429 = vpack.c.b16 %v400, %v399
        %v430 = vpack.c.b16 %v402, %v401
        %v431 = vpack.c.b16 %v404, %v403
        %v432 = vpack.c.b16 %v406, %v405
        %v433 = vpack.c.b16 %v408, %v407
        %v434 = vpack.c.b16 %v410, %v409
        %v435 = vpack.c.b16 %v412, %v411
        %v436 = vpack.c.b16 %v414, %v413
        %v437 = vpack.c.b16 %v416, %v415
        %v438 = vpack.c.b16 %v418, %v417
        %v439 = vpack.c.b16 %v420, %v419
        %v440 = vpack.c.b16 %v422, %v421
        %v441 = vpack.c.b16 %v424, %v423
        %v442 = vpack.c.b16 %v426, %v425
        %459 = vmatprep.subr.bf16.mxu0 0
        %460 = vmatpush1.bf16.msra.mxu0 %v427
        %461 = vmatprep.subr.bf16.mxu0 0
        %462 = vmatpush1.bf16.msra.mxu0 %v428
        %463 = vmatprep.subr.bf16.mxu0 0
        %464 = vmatpush1.bf16.msra.mxu0 %v429
        %465 = vmatprep.subr.bf16.mxu0 0
        %466 = vmatpush1.bf16.msra.mxu0 %v430
        %467 = vmatprep.subr.bf16.mxu0 0
        %468 = vmatpush1.bf16.msra.mxu0 %v431
        %469 = vmatprep.subr.bf16.mxu0 0
        %470 = vmatpush1.bf16.msra.mxu0 %v432
        %471 = vmatprep.subr.bf16.mxu0 0
        %472 = vmatpush1.bf16.msra.mxu0 %v433
        %473 = vmatprep.subr.bf16.mxu0 0
        %474 = vmatpush1.bf16.msra.mxu0 %v434
        %475 = vmatprep.subr.bf16.mxu0 0
        %476 = vmatpush1.bf16.msra.mxu0 %v435
        %477 = vmatprep.subr.bf16.mxu0 0
        %478 = vmatpush1.bf16.msra.mxu0 %v436
        %479 = vmatprep.subr.bf16.mxu0 0
        %480 = vmatpush1.bf16.msra.mxu0 %v437
        %481 = vmatprep.subr.bf16.mxu0 0
        %482 = vmatpush1.bf16.msra.mxu0 %v438
        %483 = vmatprep.subr.bf16.mxu0 0
        %484 = vmatpush1.bf16.msra.mxu0 %v439
        %485 = vmatprep.subr.bf16.mxu0 0
        %486 = vmatpush1.bf16.msra.mxu0 %v440
        %487 = vmatprep.subr.bf16.mxu0 0
        %488 = vmatpush1.bf16.msra.mxu0 %v441
        %489 = vmatprep.subr.bf16.mxu0 0
        %490 = vmatpush1.bf16.msra.mxu0 %v442
        %491 = vmatprep.mubr.bf16.mxu0 %v309
        %492 = vmatmul.mubr.bf16.gmra.mrb[0].mxu0 %v308
        %v493 = vpop.f32.mrb[0].mxu0
        %v494 = vadd.f32 %v361, %v493
        %v495 = vpop.f32.mrb[0].mxu0
        %v496 = vpop.f32.mrb[0].mxu0
        %v497 = vadd.f32 %v361, %v496
        %v498 = vpop.f32.mrb[0].mxu0
        %499 = vmatprep.mubr.bf16.mxu0 %v311
        %500 = vmatmul.mubr.bf16.gmra.mrb[0].mxu0 %v310
        %v501 = vpop.f32.mrb[0].mxu0
        %v502 = vadd.f32 %v361, %v501
        %v503 = vpop.f32.mrb[0].mxu0
        %v504 = vpop.f32.mrb[0].mxu0
        %v505 = vadd.f32 %v361, %v504
        %v506 = vpop.f32.mrb[0].mxu0
        %507 = vmatprep.mubr.bf16.mxu0 %v313
        %508 = vmatmul.mubr.bf16.gmra.mrb[0].mxu0 %v312
        %v509 = vpop.f32.mrb[0].mxu0
        %v510 = vadd.f32 %v361, %v509
        %v511 = vpop.f32.mrb[0].mxu0
        %v512 = vpop.f32.mrb[0].mxu0
        %v513 = vadd.f32 %v361, %v512
        %v514 = vpop.f32.mrb[0].mxu0
        %515 = vmatprep.mubr.bf16.mxu0 %v315
        %516 = vmatmul.mubr.bf16.gmra.mrb[0].mxu0 %v314
        %v517 = vpop.f32.mrb[0].mxu0
        %v518 = vadd.f32 %v361, %v517
        %v519 = vpop.f32.mrb[0].mxu0
        %v520 = vpop.f32.mrb[0].mxu0
        %v521 = vadd.f32 %v361, %v520
        %v522 = vpop.f32.mrb[0].mxu0
        %523 = vmatprep.mubr.bf16.mxu0 %v317
        %524 = vmatmul.mubr.bf16.gmra.mrb[0].mxu0 %v316
        %v525 = vpop.f32.mrb[0].mxu0
        %v526 = vadd.f32 %v361, %v525
        %v527 = vpop.f32.mrb[0].mxu0
        %v528 = vpop.f32.mrb[0].mxu0
        %v529 = vadd.f32 %v361, %v528
        %v530 = vpop.f32.mrb[0].mxu0
        %531 = vmatprep.mubr.bf16.mxu0 %v319
        %532 = vmatmul.mubr.bf16.gmra.mrb[0].mxu0 %v318
        %v533 = vpop.f32.mrb[0].mxu0
        %v534 = vadd.f32 %v361, %v533
        %v535 = vpop.f32.mrb[0].mxu0
        %v536 = vpop.f32.mrb[0].mxu0
        %v537 = vadd.f32 %v361, %v536
        %v538 = vpop.f32.mrb[0].mxu0
        %539 = vmatprep.mubr.bf16.mxu0 %v321
        %540 = vmatmul.mubr.bf16.gmra.mrb[0].mxu0 %v320
        %v541 = vpop.f32.mrb[0].mxu0
        %v542 = vadd.f32 %v361, %v541
        %v543 = vpop.f32.mrb[0].mxu0
        %v544 = vpop.f32.mrb[0].mxu0
        %v545 = vadd.f32 %v361, %v544
        %v546 = vpop.f32.mrb[0].mxu0
        %547 = vmatprep.mubr.bf16.mxu0 %v323
        %548 = vmatmul.mubr.bf16.gmra.mrb[0].mxu0 %v322
        %v549 = vpop.f32.mrb[0].mxu0
        %v550 = vadd.f32 %v361, %v549
        %v551 = vpop.f32.mrb[0].mxu0
        %v552 = vpop.f32.mrb[0].mxu0
        %v553 = vadd.f32 %v361, %v552
        %v554 = vpop.f32.mrb[0].mxu0
        %555 = vdwg.mxu0
        %v556 = vmax.f32 %v494, 0.0
        %v557 = vmax.f32 %v497, 0.0
        %v558 = vmax.f32 %v502, 0.0
        %v559 = vmax.f32 %v505, 0.0
        %v560 = vmax.f32 %v510, 0.0
        %v561 = vmax.f32 %v513, 0.0
        %v562 = vmax.f32 %v518, 0.0
        %v563 = vmax.f32 %v521, 0.0
        %v564 = vmax.f32 %v526, 0.0
        %v565 = vmax.f32 %v529, 0.0
        %v566 = vmax.f32 %v534, 0.0
        %v567 = vmax.f32 %v537, 0.0
        %v568 = vmax.f32 %v542, 0.0
        %v569 = vmax.f32 %v545, 0.0
        %v570 = vmax.f32 %v550, 0.0
        %v571 = vmax.f32 %v553, 0.0
        %v572 = vpack.c.bf16 %v557, %v556
        %v573 = vpack.c.bf16 %v559, %v558
        %v574 = vpack.c.bf16 %v561, %v560
        %v575 = vpack.c.bf16 %v563, %v562
        %v576 = vpack.c.bf16 %v565, %v564
        %v577 = vpack.c.bf16 %v567, %v566
        %v578 = vpack.c.bf16 %v569, %v568
        %v579 = vpack.c.bf16 %v571, %v570
        %v580 = vld [vmem:[#allocation7] sm:$0xf]
        %v581 = vld [vmem:[#allocation7 + $0x4] sm:$0xf]
        %v582 = vld [vmem:[#allocation7 + $0x8] sm:$0xf]
        %v583 = vld [vmem:[#allocation7 + $0xc] sm:$0xf]
        %v584 = vld [vmem:[#allocation7 + $0x10] sm:$0xf]
        %v585 = vld [vmem:[#allocation7 + $0x14] sm:$0xf]
        %v586 = vld [vmem:[#allocation7 + $0x18] sm:$0xf]
        %v587 = vld [vmem:[#allocation7 + $0x1c] sm:$0xf]
        %v588 = vld [vmem:[#allocation7 + $0x20] sm:$0xf]
        %v589 = vld [vmem:[#allocation7 + $0x24] sm:$0xf]
        %v590 = vld [vmem:[#allocation7 + $0x28] sm:$0xf]
        %v591 = vld [vmem:[#allocation7 + $0x2c] sm:$0xf]
        %v592 = vld [vmem:[#allocation7 + $0x30] sm:$0xf]
        %v593 = vld [vmem:[#allocation7 + $0x34] sm:$0xf]
        %v594 = vld [vmem:[#allocation7 + $0x38] sm:$0xf]
        %v595 = vld [vmem:[#allocation7 + $0x3c] sm:$0xf]
        %v596 = vld [vmem:[%s4] sm:$0x1]
        %v598 = vlaneseq
        %v599 = vshrl.u32 %v598, 7
        %v600 = vsub.s32 0, %v599
        %v601 = vrot.slane %v596, %v600
        %v619 = vunpack.c.l.b16 %v580
        %v620 = vunpack.c.l.b16 %v581
        %v621 = vunpack.c.l.b16 %v582
        %v622 = vunpack.c.l.b16 %v583
        %v623 = vunpack.c.l.b16 %v584
        %v624 = vunpack.c.l.b16 %v585
        %v625 = vunpack.c.l.b16 %v586
        %v626 = vunpack.c.l.b16 %v587
        %v627 = vunpack.c.l.b16 %v588
        %v628 = vunpack.c.l.b16 %v589
        %v629 = vunpack.c.l.b16 %v590
        %v630 = vunpack.c.l.b16 %v591
        %v631 = vunpack.c.l.b16 %v592
        %v632 = vunpack.c.l.b16 %v593
        %v633 = vunpack.c.l.b16 %v594
        %v634 = vunpack.c.l.b16 %v595
        %v635 = vpack.c.b16 %v620, %v619
        %v636 = vpack.c.b16 %v622, %v621
        %v637 = vpack.c.b16 %v624, %v623
        %v638 = vpack.c.b16 %v626, %v625
        %v639 = vpack.c.b16 %v628, %v627
        %v640 = vpack.c.b16 %v630, %v629
        %v641 = vpack.c.b16 %v632, %v631
        %v642 = vpack.c.b16 %v634, %v633
        %651 = vmatprep.subr.bf16.mxu0 0
        %652 = vmatpush1.bf16.msra.mxu0 %v635
        %653 = vmatprep.subr.bf16.mxu0 0
        %654 = vmatpush1.bf16.msra.mxu0 %v636
        %655 = vmatprep.subr.bf16.mxu0 0
        %656 = vmatpush1.bf16.msra.mxu0 %v637
        %657 = vmatprep.subr.bf16.mxu0 0
        %658 = vmatpush1.bf16.msra.mxu0 %v638
        %659 = vmatprep.subr.bf16.mxu0 0
        %660 = vmatpush1.bf16.msra.mxu0 %v639
        %661 = vmatprep.subr.bf16.mxu0 0
        %662 = vmatpush1.bf16.msra.mxu0 %v640
        %663 = vmatprep.subr.bf16.mxu0 0
        %664 = vmatpush1.bf16.msra.mxu0 %v641
        %665 = vmatprep.subr.bf16.mxu0 0
        %666 = vmatpush1.bf16.msra.mxu0 %v642
        %667 = vmatprep.subr.bf16.mxu0 0
        %668 = vmatpush1.bf16.msra.mxu0 0
        %669 = vmatprep.subr.bf16.mxu0 0
        %670 = vmatpush1.bf16.msra.mxu0 0
        %671 = vmatprep.subr.bf16.mxu0 0
        %672 = vmatpush1.bf16.msra.mxu0 0
        %673 = vmatprep.subr.bf16.mxu0 0
        %674 = vmatpush1.bf16.msra.mxu0 0
        %675 = vmatprep.subr.bf16.mxu0 0
        %676 = vmatpush1.bf16.msra.mxu0 0
        %677 = vmatprep.subr.bf16.mxu0 0
        %678 = vmatpush1.bf16.msra.mxu0 0
        %679 = vmatprep.subr.bf16.mxu0 0
        %680 = vmatpush1.bf16.msra.mxu0 0
        %681 = vmatprep.subr.bf16.mxu0 0
        %682 = vmatpush1.bf16.msra.mxu0 0
        %683 = vmatprep.mubr.bf16.mxu0 0
        %684 = vmatmul.mubr.bf16.gmra.mrb[0].mxu0 %v572
        %v685 = vpop.f32.mrb[0].mxu0
        %v686 = vadd.f32 %v601, %v685
        %v687 = vpop.f32.mrb[0].mxu0
        %v688 = vpop.f32.mrb[0].mxu0
        %v689 = vadd.f32 %v601, %v688
        %v690 = vpop.f32.mrb[0].mxu0
        %691 = vmatprep.mubr.bf16.mxu0 0
        %692 = vmatmul.mubr.bf16.gmra.mrb[0].mxu0 %v573
        %v693 = vpop.f32.mrb[0].mxu0
        %v694 = vadd.f32 %v601, %v693
        %v695 = vpop.f32.mrb[0].mxu0
        %v696 = vpop.f32.mrb[0].mxu0
        %v697 = vadd.f32 %v601, %v696
        %v698 = vpop.f32.mrb[0].mxu0
        %699 = vmatprep.mubr.bf16.mxu0 0
        %700 = vmatmul.mubr.bf16.gmra.mrb[0].mxu0 %v574
        %v701 = vpop.f32.mrb[0].mxu0
        %v702 = vadd.f32 %v601, %v701
        %v703 = vpop.f32.mrb[0].mxu0
        %v704 = vpop.f32.mrb[0].mxu0
        %v705 = vadd.f32 %v601, %v704
        %v706 = vpop.f32.mrb[0].mxu0
        %707 = vmatprep.mubr.bf16.mxu0 0
        %708 = vmatmul.mubr.bf16.gmra.mrb[0].mxu0 %v575
        %v709 = vpop.f32.mrb[0].mxu0
        %v710 = vadd.f32 %v601, %v709
        %v711 = vpop.f32.mrb[0].mxu0
        %v712 = vpop.f32.mrb[0].mxu0
        %v713 = vadd.f32 %v601, %v712
        %v714 = vpop.f32.mrb[0].mxu0
        %715 = vmatprep.mubr.bf16.mxu0 0
        %716 = vmatmul.mubr.bf16.gmra.mrb[0].mxu0 %v576
        %v717 = vpop.f32.mrb[0].mxu0
        %v718 = vadd.f32 %v601, %v717
        %v719 = vpop.f32.mrb[0].mxu0
        %v720 = vpop.f32.mrb[0].mxu0
        %v721 = vadd.f32 %v601, %v720
        %v722 = vpop.f32.mrb[0].mxu0
        %723 = vmatprep.mubr.bf16.mxu0 0
        %724 = vmatmul.mubr.bf16.gmra.mrb[0].mxu0 %v577
        %v725 = vpop.f32.mrb[0].mxu0
        %v726 = vadd.f32 %v601, %v725
        %v727 = vpop.f32.mrb[0].mxu0
        %v728 = vpop.f32.mrb[0].mxu0
        %v729 = vadd.f32 %v601, %v728
        %v730 = vpop.f32.mrb[0].mxu0
        %731 = vmatprep.mubr.bf16.mxu0 0
        %732 = vmatmul.mubr.bf16.gmra.mrb[0].mxu0 %v578
        %v733 = vpop.f32.mrb[0].mxu0
        %v734 = vadd.f32 %v601, %v733
        %v735 = vpop.f32.mrb[0].mxu0
        %v736 = vpop.f32.mrb[0].mxu0
        %v737 = vadd.f32 %v601, %v736
        %v738 = vpop.f32.mrb[0].mxu0
        %739 = vmatprep.mubr.bf16.mxu0 0
        %740 = vmatmul.mubr.bf16.gmra.mrb[0].mxu0 %v579
        %v741 = vpop.f32.mrb[0].mxu0
        %v742 = vadd.f32 %v601, %v741
        %v743 = vpop.f32.mrb[0].mxu0
        %v744 = vpop.f32.mrb[0].mxu0
        %v745 = vadd.f32 %v601, %v744
        %v746 = vpop.f32.mrb[0].mxu0
        %747 = vdwg.mxu0
        %748 = vst [vmem:[%s272] sm:$0xff] %v686
        %749 = vst [vmem:[%s272 + $0x8] sm:$0xff] %v689
        %750 = vst [vmem:[%s272 + $0x10] sm:$0xff] %v694
        %751 = vst [vmem:[%s272 + $0x18] sm:$0xff] %v697
        %752 = vst [vmem:[%s272 + $0x20] sm:$0xff] %v702
        %753 = vst [vmem:[%s272 + $0x28] sm:$0xff] %v705
        %754 = vst [vmem:[%s272 + $0x30] sm:$0xff] %v710
        %755 = vst [vmem:[%s272 + $0x38] sm:$0xff] %v713
        %756 = vst [vmem:[%s272 + $0x40] sm:$0xff] %v718
        %757 = vst [vmem:[%s272 + $0x48] sm:$0xff] %v721
        %758 = vst [vmem:[%s272 + $0x50] sm:$0xff] %v726
        %759 = vst [vmem:[%s272 + $0x58] sm:$0xff] %v729
        %760 = vst [vmem:[%s272 + $0x60] sm:$0xff] %v734
        %761 = vst [vmem:[%s272 + $0x68] sm:$0xff] %v737
        %762 = vst [vmem:[%s272 + $0x70] sm:$0xff] %v742
        %763 = vst [vmem:[%s272 + $0x78] sm:$0xff] %v745
        %s764 = sand.u32 %s141, 1
        %s765 = scalar_lea.sflag [#allocation4], %s764
        %s766 = sand.u32 %s141, 1
        %s767 = smul.addr %s766, 128
        %s768 = scalar_lea.vmem [#allocation8], %s767
        // Predicated region
        $region53: #{tpu_custom_call.1} parent=39 // pred_check
          %p769 = pneg %p151
        $region54: #{tpu_custom_call.1} parent=39 // pred_check_branch
          %771 = sbr.rel (%p769) target = $region56
        $region55: #{tpu_custom_call.1} parent=39 // pred_region
          %s772 = smul.u32 16, %s23
          %s774 = ssub.s32 2048, 2048
          %775 = vsyncadd %s765, %s774
          %s776 = smul.addr %s772, 128
          %s777 = scalar_lea.hbm %s5, %s776
          %s778 = sshll.u32 %s768, 4
          %s779 = int_to_ptr.vmem [resolvable:$true] %s778
          %784 = dma.vmem_to_hbm [thread:$0]  %s779, 2048, %s777, %s765, 128, 128, 8
        $region56: #{tpu_custom_call.1} parent=39 // pred_fallthru
          _
      $region40: #{tpu_custom_call.1} parent=5 // pred_fallthru
        _
      %p785 = scmp.le.s32.totalorder 2, %s18
      // Predicated region
      $region57: #{tpu_custom_call.1} parent=5 // pred_check
        %p786 = pneg %p785
      $region58: #{tpu_custom_call.1} parent=5 // pred_check_branch
        %788 = sbr.rel (%p786) target = $region60
      $region59: #{tpu_custom_call.1} parent=5 // pred_region
        %s789 = ssub.s32 %s18, 2
        // Predicated region
        $region61: #{tpu_custom_call.1} parent=59 // pred_check
          %p790 = pneg %p157
        $region62: #{tpu_custom_call.1} parent=59 // pred_check_branch
          %792 = sbr.rel (%p790) target = $region64
        $region63: #{tpu_custom_call.1} parent=59 // pred_region
          %s793 = sand.u32 %s142, 1
          %s794 = scalar_lea.sflag [#allocation4], %s793
          %s795 = sand.u32 %s142, 1
          %s796 = smul.addr %s795, 128
          %s797 = scalar_lea.vmem [#allocation8], %s796
          %798 = dma.done %s794, 2048
        $region64: #{tpu_custom_call.1} parent=59 // pred_fallthru
          _
      $region60: #{tpu_custom_call.1} parent=5 // pred_fallthru
        _
    $region6: #{tpu_custom_call.1} parent=1 // loop_footer
      %s22 = sadd.s32 1, %s18
    $region7: #{tpu_custom_call.1} parent=1 // loop_footer_branch
      %17 = sbr.rel target = $region3
    $region8: #{tpu_custom_call.1} parent=1 // loop_exit
      _
    %799 = vsyncpa [#allocation3], 1
    %s800 = scalar_lea.sflag [#allocation3], 1
    %801 = vsyncpa %s800, 1
    %802 = vsyncpa [#allocation6], 1
    %803 = vsyncpa [#allocation4], 1
    %s804 = scalar_lea.sflag [#allocation4], 1
    %805 = vsyncpa %s804, 1

</llo_original>
